<compile_context>
chip_gen: v7x
topology: tpu7x:2x2x1
jax: 0.10.0
libtpu: 0.0.40
codegen_flags: <defaults>
</compile_context>

<pallas_src>
import functools

import jax
import jax.numpy as jnp
from jax import lax
from jax.experimental import pallas as pl
from jax.experimental.pallas import tpu as pltpu


def _cross_entropy_kernel(preds_ref, gt_ref, partial_ref, *, n_true, tn):
    """partial_ref <- sum over this tile's valid rows of -log_softmax(x)[row, gt[row]]."""
    i = pl.program_id(0)

    x = preds_ref[...].astype(jnp.float32)                           # (TN, C) f32
    tn_b, c = x.shape

    # Numerically stable logsumexp along the class (lane) axis; `shifted` is reused
    # for both the exp-sum and the target gather (one fewer (TN, C) temporary).
    row_max = jnp.max(x, axis=-1, keepdims=True)                     # (TN, 1)
    shifted = x - row_max                                            # (TN, C)
    sum_exp = jnp.sum(jnp.exp(shifted), axis=-1, keepdims=True)      # (TN, 1)

    # Gather shifted[row, gt[row]] via iota == label mask (no (TN, C) log-probs tile).
    class_ids = lax.broadcasted_iota(jnp.int32, (tn_b, c), 1)        # (TN, C) i32
    target = jnp.sum(
        jnp.where(class_ids == gt_ref[...], shifted, 0.0),
        axis=-1, keepdims=True)                                      # (TN, 1)

    # lse - x[gt] == log(sum_exp) - shifted[gt]
    per_row = jnp.log(sum_exp) - target                              # (TN, 1)

    # Mask rows past the true batch size.  The last tile may be partially out of
    # bounds (unpadded preds), so per_row can be garbage/NaN there — the select
    # drops those rows before the reduction.
    row_ids = i * tn + lax.broadcasted_iota(jnp.int32, (tn_b, 1), 0)
    psum = jnp.sum(jnp.where(row_ids < n_true, per_row, 0.0))        # scalar partial sum

    # Lane-dense (1, 8, 128) output block -> unmasked store; wrapper reads [i, 0, 0].
    partial_ref[...] = jnp.broadcast_to(psum, partial_ref.shape)


def _round_up(x, m):
    return ((x + m - 1) // m) * m


def _vmem_caps():
    """(tile-sizing working-set budget, vmem_limit_bytes) for the current generation."""
    cap = 64 * 1024 * 1024                      # conservative default = v7x per-core VMEM
    try:
        info = pltpu.get_tpu_info()
        cap = int(getattr(info, "vmem_capacity_bytes", cap)) or cap
    except Exception:
        pass
    # v7x (64 MiB): limit ~48 MiB.  v5e/v6e (128 MiB): limit ~96 MiB.
    limit = min((cap * 3) // 4, 100 * 1024 * 1024)
    budget = (limit * 2) // 3                   # headroom for output buffers / compiler scratch
    return budget, limit


def _pick_tn(n, c, itemsize, budget):
    """Row tile sized by bytes against the real per-step VMEM working set."""
    align = {4: 8, 2: 16, 1: 32}.get(itemsize, 8)   # sublane packing of the input dtype
    # VMEM bytes per batch row:
    #   2 * c * itemsize  : double-buffered logits input tile
    #   12 * c            : f32 upcast + iota / select / exp temporaries (~3 f32 passes)
    #   2 * 512           : (TN, 1) int32 label block lane-padded to 128, double-buffered
    per_row = c * (2 * itemsize + 12) + 1024
    tn = budget // per_row
    # ~4 MiB of logits per grid step already amortizes the ~0.35us per-step overhead.
    tn = min(tn, (4 * 1024 * 1024) // max(c * itemsize, 1))
    # v7x megacore balance: prefer >= 8 grid steps when each step still moves >= 1 MiB.
    eight_way = _round_up(-(-n // 8), align)
    if eight_way * c * itemsize >= (1 << 20):
        tn = min(tn, eight_way)
    tn = min(tn, _round_up(n, align))           # never bigger than one (aligned) batch
    tn = max(align, (tn // align) * align)
    return int(tn)


def cross_entropy_loss(preds, gt, *, tile_rows=None):
    """Pallas equivalent of CrossEntropyLoss.forward(preds, gt)."""
    assert preds.ndim == 2, "expected (N, C) logits"
    n, c = preds.shape
    itemsize = jnp.dtype(preds.dtype).itemsize
    budget, vmem_limit = _vmem_caps()

    if tile_rows is None:
        tn = _pick_tn(n, c, itemsize, budget)
    else:
        align = {4: 8, 2: 16, 1: 32}.get(itemsize, 8)
        tn = max(align, (int(tile_rows) // align) * align)

    num_tiles = pl.cdiv(n, tn)
    n_pad = num_tiles * tn

    # Only the tiny label vector is padded for ragged N; the (N, C) logits are NOT
    # re-copied in HBM (the in-kernel row mask covers the partial last block).
    gt_i32 = gt.astype(jnp.int32)
    if n_pad != n:
        gt_i32 = jnp.pad(gt_i32, (0, n_pad - n))
    gt2d = gt_i32.reshape(n_pad, 1)

    if tn > n:
        # Whole batch fits in a single tile: pad the handful of missing rows so the
        # block never exceeds the array extent (negligible cost at this size).
        preds = jnp.pad(preds, ((0, tn - n), (0, 0)))

    partials = pl.pallas_call(
        functools.partial(_cross_entropy_kernel, n_true=n, tn=tn),
        out_shape=jax.ShapeDtypeStruct((num_tiles, 8, 128), jnp.float32),
        grid=(num_tiles,),
        in_specs=[
            pl.BlockSpec((tn, c), lambda i: (i, 0)),   # logits row tile, native dtype
            pl.BlockSpec((tn, 1), lambda i: (i, 0)),   # labels row tile
        ],
        out_specs=pl.BlockSpec((1, 8, 128), lambda i: (i, 0, 0)),
        compiler_params=pltpu.CompilerParams(
            dimension_semantics=("parallel",),         # v7x: both TCs split the batch grid
            vmem_limit_bytes=vmem_limit,
        ),
    )(preds, gt2d)

    # TODO(synk): add a jax.custom_vjp backward kernel ((softmax(x) - onehot(gt)) / N)
    # before training through this; jax.grad through pallas_call is unsupported.
    # TODO(synk): for vocab-scale C (>= ~16k) add an inner "arbitrary" class-axis grid
    # with online logsumexp so the f32 working set stays (TN, TC).
    loss = jnp.sum(partials[:, 0, 0]) / jnp.float32(n)   # mean over the *true* batch size
    # Device scalar (jit-safe); PyTorch's .item() would force a host sync.
    metrics = {"loss": loss}
    return loss, metrics


if __name__ == "__main__":
    key = jax.random.PRNGKey(0)
    ks = jax.random.split(key, 8)

    def ref_loss(preds, gt):
        logp = jax.nn.log_softmax(preds.astype(jnp.float32), axis=-1)
        return -jnp.mean(jnp.take_along_axis(logp, gt[:, None], axis=-1)[:, 0])

    # Case 1: small aligned shapes (batch=8, classes=32), f32.
    N, C = 8, 32
    preds = jax.random.normal(ks[0], (N, C), dtype=jnp.float32)
    gt = jax.random.randint(ks[1], (N,), 0, C, dtype=jnp.int32)
    loss, metrics = cross_entropy_loss(preds, gt)
    jax.block_until_ready(loss)
    assert jnp.allclose(loss, ref_loss(preds, gt), atol=1e-5, rtol=1e-5), (loss, ref_loss(preds, gt))

    # Case 2: ragged batch (N=13) -> single-tile path with row masking.
    N2, C2 = 13, 32
    preds2 = jax.random.normal(ks[2], (N2, C2), dtype=jnp.float32)
    gt2 = jax.random.randint(ks[3], (N2,), 0, C2, dtype=jnp.int32)
    loss2, _ = cross_entropy_loss(preds2, gt2)
    jax.block_until_ready(loss2)
    assert jnp.allclose(loss2, ref_loss(preds2, gt2), atol=1e-5, rtol=1e-5), (loss2, ref_loss(preds2, gt2))

    # Case 3: multi-tile parallel grid with an UNPADDED, partially out-of-bounds last
    # block (N=50, forced 16-row tile -> 4 grid steps, last one row-masked).
    N3, C3 = 50, 32
    preds3 = jax.random.normal(ks[4], (N3, C3), dtype=jnp.float32)
    gt3 = jax.random.randint(ks[5], (N3,), 0, C3, dtype=jnp.int32)
    loss3, _ = cross_entropy_loss(preds3, gt3, tile_rows=16)
    jax.block_until_ready(loss3)
    assert jnp.allclose(loss3, ref_loss(preds3, gt3), atol=1e-5, rtol=1e-5), (loss3, ref_loss(preds3, gt3))

    # Case 4: bf16 logits, non-multiple-of-128 class count (16-row sublane align path).
    N4, C4 = 37, 10
    preds4 = jax.random.normal(ks[6], (N4, C4), dtype=jnp.float32).astype(jnp.bfloat16)
    gt4 = jax.random.randint(ks[7], (N4,), 0, C4, dtype=jnp.int32)
    loss4, _ = cross_entropy_loss(preds4, gt4)
    jax.block_until_ready(loss4)
    assert jnp.allclose(loss4, ref_loss(preds4, gt4), atol=2e-3, rtol=2e-3), (loss4, ref_loss(preds4, gt4))

    print("KERNEL_OK")
</pallas_src>

<mosaic_0001>
module attributes {stable_mosaic.version = 11 : i64} {
  func.func @_cross_entropy_kernel(%arg0: i32, %arg1: memref<8x32xf32, #tpu.memory_space<vmem>>, %arg2: memref<8x1xi32, #tpu.memory_space<vmem>>, %arg3: memref<1x8x128xf32, #tpu.memory_space<vmem>>) attributes {dimension_semantics = [#tpu.dimension_semantics<parallel>], iteration_bounds = array<i64: 1>, scalar_prefetch = 0 : i64, scratch_operands = 0 : i64, tpu.core_type = #tpu.core_type<tc>, window_params = [{transform_indices = @transform_0, window_bounds = array<i64: 8, 32>}, {transform_indices = @transform_1, window_bounds = array<i64: 8, 1>}, {transform_indices = @transform_2, window_bounds = array<i64: 1, 8, 128>}]} {
    %c0 = arith.constant 0 : index
    %c0_0 = arith.constant 0 : index
    %0 = vector.load %arg1[%c0, %c0_0] : memref<8x32xf32, #tpu.memory_space<vmem>>, vector<8x32xf32>
    %cst = arith.constant dense<0xFF800000> : vector<8xf32>
    %1 = vector.multi_reduction <maximumf>, %0, %cst [1] : vector<8x32xf32> to vector<8xf32>
    %2 = vector.shape_cast %1 : vector<8xf32> to vector<8x1xf32>
    %3 = vector.broadcast %2 : vector<8x1xf32> to vector<8x32xf32>
    %4 = arith.subf %0, %3 : vector<8x32xf32>
    %5 = math.exp %4 : vector<8x32xf32>
    %cst_1 = arith.constant dense<0.000000e+00> : vector<8xf32>
    %6 = vector.multi_reduction <add>, %5, %cst_1 [1] : vector<8x32xf32> to vector<8xf32>
    %7 = vector.shape_cast %6 : vector<8xf32> to vector<8x1xf32>
    %8 = tpu.iota {dimensions = array<i32: 1>} : vector<8x32xi32>
    %c0_2 = arith.constant 0 : index
    %c0_3 = arith.constant 0 : index
    %9 = vector.load %arg2[%c0_2, %c0_3] : memref<8x1xi32, #tpu.memory_space<vmem>>, vector<8x1xi32>
    %10 = vector.broadcast %9 : vector<8x1xi32> to vector<8x32xi32>
    %11 = arith.cmpi eq, %8, %10 : vector<8x32xi32>
    %cst_4 = arith.constant 0.000000e+00 : f32
    %12 = vector.broadcast %cst_4 : f32 to vector<8x32xf32>
    %13 = arith.select %11, %4, %12 : vector<8x32xi1>, vector<8x32xf32>
    %cst_5 = arith.constant dense<0.000000e+00> : vector<8xf32>
    %14 = vector.multi_reduction <add>, %13, %cst_5 [1] : vector<8x32xf32> to vector<8xf32>
    %15 = vector.shape_cast %14 : vector<8xf32> to vector<8x1xf32>
    %16 = math.log %7 : vector<8x1xf32>
    %17 = arith.subf %16, %15 : vector<8x1xf32>
    %c8_i32 = arith.constant 8 : i32
    %18 = arith.muli %arg0, %c8_i32 : i32
    %19 = tpu.iota {dimensions = array<i32: 0>} : vector<8x1xi32>
    %20 = vector.broadcast %18 : i32 to vector<8x1xi32>
    %21 = arith.addi %20, %19 : vector<8x1xi32>
    %c8_i32_6 = arith.constant 8 : i32
    %22 = vector.broadcast %c8_i32_6 : i32 to vector<8x1xi32>
    %23 = arith.cmpi slt, %21, %22 : vector<8x1xi32>
    %cst_7 = arith.constant 0.000000e+00 : f32
    %24 = vector.broadcast %cst_7 : f32 to vector<8x1xf32>
    %25 = arith.select %23, %17, %24 : vector<8x1xi1>, vector<8x1xf32>
    %26 = vector.shape_cast %25 : vector<8x1xf32> to vector<1x8x1xf32>
    %cst_8 = arith.constant dense<0.000000e+00> : vector<1xf32>
    %27 = vector.multi_reduction <add>, %26, %cst_8 [1, 2] : vector<1x8x1xf32> to vector<1xf32>
    %28 = vector.shape_cast %27 : vector<1xf32> to vector<1x1x1xf32>
    %29 = vector.extract %28[0, 0, 0] : f32 from vector<1x1x1xf32>
    %30 = vector.broadcast %29 : f32 to vector<1x8x128xf32>
    %c0_9 = arith.constant 0 : index
    %c0_10 = arith.constant 0 : index
    %c0_11 = arith.constant 0 : index
    %31 = vector.load %arg3[%c0_9, %c0_10, %c0_11] : memref<1x8x128xf32, #tpu.memory_space<vmem>>, vector<1x8x128xf32>
    tpu.vector_store %arg3[%c0_9, %c0_10, %c0_11], %30 {strides = array<i32>} : memref<1x8x128xf32, #tpu.memory_space<vmem>>, vector<1x8x128xf32>,
    return
  }
  func.func @transform_0(%arg0: i32) -> (i32, i32) {
    %c0_i32 = arith.constant 0 : i32
    %c0_i32_0 = arith.constant 0 : i32
    return %arg0, %c0_i32 : i32, i32
  }
  func.func @transform_1(%arg0: i32) -> (i32, i32) {
    %c0_i32 = arith.constant 0 : i32
    %c0_i32_0 = arith.constant 0 : i32
    return %arg0, %c0_i32 : i32, i32
  }
  func.func @transform_2(%arg0: i32) -> (i32, i32, i32) {
    %c0_i32 = arith.constant 0 : i32
    %c0_i32_0 = arith.constant 0 : i32
    %c0_i32_1 = arith.constant 0 : i32
    return %arg0, %c0_i32, %c0_i32_0 : i32, i32, i32
  }
}

</mosaic_0001>

<llo_original>
// kernel: tpu_custom_call.1
$region0: #{tpu_custom_call.1}
  #allocation0 [shape = 'u32[]', space=smem, size = 0x4, offset = 0x4, fixed_abs, tag = 'smem constant byte address 0x4 - core index']
  #allocation1 [shape = 'u32[144,128]{1,0:T(1,128)}', space=vmem, size = 0x12000, scoped, tag = 'internal scratch']
  %s0 = inlined_call_operand.vmem [shape: f32[8,32], index: 0, kind: input, shape index: {}]
  %s1 = inlined_call_operand.vmem [shape: s32[8,1], index: 1, kind: input, shape index: {}]
  %s2 = inlined_call_operand.hbm [shape: f32[1,8,128], index: 2, kind: output, shape index: {}]
  %s3 = sld [smem:[#allocation0]]
  $region18: #{tpu_custom_call.1} parent=0
    _
  %s5 = ssub.s32 1, %s3
  %s6 = scalar_select 0, %s5, %s3
  $region1: #{tpu_custom_call.1} parent=0
    #allocation2 [shape = 'u8[4096]{0}', space=vmem, size = 0x1000, scoped, tag = 'output window, operand 0, single buffered']
    #allocation3 [shape = 's32[1]{0}', space=sflag, size = 0x4, scoped, tag = 'scoped memory for tpu_custom_call.1']
    %7 = vsyncpa [#allocation3], 0
    // Predicated region
    $region2: #{tpu_custom_call.1} parent=1 // pred_check
      _
    $region3: #{tpu_custom_call.1} parent=1 // pred_check_branch
      %9 = sbr.rel (0) target = $region5
    $region4: #{tpu_custom_call.1} parent=1 // pred_region
      _
    $region5: #{tpu_custom_call.1} parent=1 // pred_fallthru
      _
    // Predicated region
    $region6: #{tpu_custom_call.1} parent=1 // pred_check
      _
    $region7: #{tpu_custom_call.1} parent=1 // pred_check_branch
      %11 = sbr.rel (0) target = $region9
    $region8: #{tpu_custom_call.1} parent=1 // pred_region
      _
    $region9: #{tpu_custom_call.1} parent=1 // pred_fallthru
      _
    %v12 = vld [vmem:[%s0] sm:$0xff]
    %vm13 = vcmask 261120
    %v14 = vsel %vm13, %v12, -inf
    %15 = vmax.xlane.f32.xlu0 %v14
    %v16 = vpop.xlane.xlu0 %15
    %v17 = vsub.f32 %v12, %v16
    %v18 = vmul.f32 %v17, 1.442695
    %v19 = vpow.pop %v18
    %v20 = vsel %vm13, %v19, 0.0
    %21 = vadd.xlane.f32.xlu0 %v20
    %v22 = vpop.xlane.xlu0 %21
    %v23 = vlaneseq
    %v24 = vand.u32 %v23, 127
    %v25 = vld [vmem:[%s1] sm:$0xff]
    %26 = vset.pattern.permute.xlu0 0
    %27 = vperm.xlu0 %26, %v25
    %v28 = vpop.permute.xlu0 %27
    %vm29 = vcmp.eq.s32.totalorder %v24, %v28
    %v30 = vsel %vm29, %v17, 0.0
    %v31 = vsel %vm13, %v30, 0.0
    %32 = vadd.xlane.f32.xlu0 %v31
    %v33 = vpop.xlane.xlu0 %32
    %v34 = vlog2.pop %v22
    %v35 = vmul.f32 %v34, 0.6931472
    %v36 = vsub.f32 %v35, %v33
    %s37 = smul.u32 0, 8
    %v38 = vlaneseq
    %v39 = vshrl.u32 %v38, 7
    %v40 = vstv %s37
    %v41 = vadd.s32 %v40, %v39
    %vm42 = vcmp.lt.s32.totalorder %v41, 8
    %v43 = vsel %vm42, %v36, 0.0
    %vm44 = vcmask 7168
    %v45 = vsel %vm44, %v43, 0.0
    %46 = vadd.xlane.f32.xlu0 %v45
    %v47 = vpop.xlane.xlu0 %46
    %v48 = vrot.slane %v47, 4
    %v49 = vadd.f32 %v47, %v48
    %v50 = vrot.slane %v49, 2
    %v51 = vadd.f32 %v49, %v50
    %v52 = vrot.slane %v51, 1
    %v53 = vadd.f32 %v51, %v52
    %s54 = vtos %v53
    %v55 = vstv %s54
    %56 = vst [vmem:[#allocation2] sm:$0xff] %v55
    // Predicated region
    $region10: #{tpu_custom_call.1} parent=1 // pred_check
      _
    $region11: #{tpu_custom_call.1} parent=1 // pred_check_branch
      %58 = sbr.rel (0) target = $region13
    $region12: #{tpu_custom_call.1} parent=1 // pred_region
      %s60 = ssub.s32 128, 128
      %61 = vsyncadd [#allocation3], %s60
      %s63 = sshll.u32 [#allocation2], 4
      %s64 = int_to_ptr.vmem [resolvable:$true] %s63
      %66 = dma.vmem_to_hbm [thread:$0]  %s64, 128, %s2, [#allocation3]
    $region13: #{tpu_custom_call.1} parent=1 // pred_fallthru
      _
    // Predicated region
    $region14: #{tpu_custom_call.1} parent=1 // pred_check
      _
    $region15: #{tpu_custom_call.1} parent=1 // pred_check_branch
      %68 = sbr.rel (0) target = $region17
    $region16: #{tpu_custom_call.1} parent=1 // pred_region
      %69 = dma.done [#allocation3], 128
    $region17: #{tpu_custom_call.1} parent=1 // pred_fallthru
      _
    %70 = vsyncpa [#allocation3], 1

</llo_original>
